<compile_context>
chip_gen: v7x
topology: tpu7x:2x2x1
jax: 0.10.0
libtpu: 0.0.40
codegen_flags: <defaults>
</compile_context>

<pallas_src>
import functools

import jax
import jax.numpy as jnp
from jax.experimental import pallas as pl
from jax.experimental.pallas import tpu as pltpu


# ---------------- helpers ----------------

def _cdiv(a, b):
    return (a + b - 1) // b


def _round_up(x, m):
    return _cdiv(x, m) * m


def _choose_row_tiles(n, r, cin, target_rows=512, min_steps=8):
    """Pick (block_rows, chunk_rows) for the folded (rows, 128) spatial layout."""
    # Inner chunk rows: (cin + 1) f32 chunk slabs must stay < ~40 vregs.
    cr = max(8, min(64, ((320 // (cin + 1)) // 8) * 8))
    cr = min(cr, max(8, _round_up(r, 8)))
    # Block rows: as large as possible (amortize per-step overhead, big DMAs)
    # while keeping >= min_steps total grid steps for v7x's two TensorCores.
    tr = min((target_rows // cr) * cr, _round_up(r, cr))
    tr = max(cr, tr)
    while n * _cdiv(r, tr) < min_steps and tr > cr:
        tr = max(cr, ((tr // 2) // cr) * cr)
    return tr, cr


def _choose_spatial_tile(n, s_pad, cin, k, itemsize,
                         vmem_budget=16 * 1024 * 1024, min_steps=8,
                         max_tile=256 * 1024):
    """Spatial tile (elements) for the MXU path; lane aligned, VMEM bounded."""
    per_elem = 2 * (cin + k) * max(itemsize, 4)      # double-buffered in + out
    ts = min(max_tile, s_pad, max(128, vmem_budget // per_elem))
    ts = max(128, (ts // 128) * 128)
    while n * _cdiv(s_pad, ts) < min_steps and ts > 128:
        ts = max(128, ((ts // 2) // 128) * 128)
    return ts


# ---------------- Pallas kernels ----------------

def _pwise_vpu_kernel(x_ref, w_ref, b_ref, o_ref, *, chunk_rows):
    """Small-channel path.

    x_ref: (Cin, TR, 128) VMEM, w_ref: (K*Cin,) SMEM, b_ref: (K,) SMEM,
    o_ref: (K, TR, 128) VMEM.
    """
    cin = x_ref.shape[0]
    k_out = o_ref.shape[0]
    tr = x_ref.shape[1]
    n_chunks = tr // chunk_rows

    # Hoist all SMEM scalar reads out of the chunk loop (not CSE'd inside it).
    w_sc = [[w_ref[k * cin + c] for c in range(cin)] for k in range(k_out)]
    b_sc = [b_ref[k] for k in range(k_out)]

    def chunk(i, carry):
        r0 = pl.multiple_of(i * chunk_rows, chunk_rows)
        rows = pl.ds(r0, chunk_rows)
        # Dense (chunk_rows, 128) per-channel slabs, f32 compute (v5e-safe).
        xs = [x_ref[c, rows, :].astype(jnp.float32) for c in range(cin)]
        for k in range(k_out):
            acc = xs[0] * w_sc[k][0]
            for c in range(1, cin):
                acc = acc + xs[c] * w_sc[k][c]          # VPU scalar-bcast FMA
            o_ref[k, rows, :] = (acc + b_sc[k]).astype(o_ref.dtype)
        return carry

    jax.lax.fori_loop(0, n_chunks, chunk, 0, unroll=(n_chunks <= 8))


def _pwise_mxu_kernel(x_ref, w_ref, b_ref, o_ref):
    """Large-channel path.

    x_ref: (Cin, TS) VMEM, w_ref: (K, Cin) VMEM, b_ref: (K, 1) VMEM,
    o_ref: (K, TS) VMEM.
    """
    x = x_ref[...]
    w = w_ref[...].astype(x.dtype)
    acc = jnp.dot(w, x, preferred_element_type=jnp.float32)   # MXU channel mix
    o_ref[...] = (acc + b_ref[...]).astype(o_ref.dtype)


# ---------------- wrappers ----------------

def _pwise_vpu(x3, w, b, n, cin, k, s_pad):
    r = s_pad // 128
    x4 = x3.reshape(n, cin, r, 128)                  # contiguous fold, no copy
    tr, cr = _choose_row_tiles(n, r, cin)
    grid = (n, _cdiv(r, tr))

    out4 = pl.pallas_call(
        functools.partial(_pwise_vpu_kernel, chunk_rows=cr),
        out_shape=jax.ShapeDtypeStruct((n, k, r, 128), x3.dtype),
        grid_spec=pltpu.PrefetchScalarGridSpec(
            num_scalar_prefetch=0,
            grid=grid,
            in_specs=[
                pl.BlockSpec((None, cin, tr, 128), lambda ni, ri: (ni, 0, ri, 0)),
                pl.BlockSpec(memory_space=pltpu.MemorySpace.SMEM),   # flat weights
                pl.BlockSpec(memory_space=pltpu.MemorySpace.SMEM),   # bias
            ],
            out_specs=pl.BlockSpec((None, k, tr, 128), lambda ni, ri: (ni, 0, ri, 0)),
        ),
        compiler_params=pltpu.CompilerParams(
            dimension_semantics=("parallel", "parallel"),
            vmem_limit_bytes=32 * 1024 * 1024,
        ),
    )(x4, w.astype(jnp.float32).reshape(-1), b.astype(jnp.float32))
    return out4.reshape(n, k, r * 128)


def _pwise_mxu(x3, w, b, n, cin, k, s_pad):
    ts = _choose_spatial_tile(n, s_pad, cin, k, jnp.dtype(x3.dtype).itemsize)
    grid = (n, _cdiv(s_pad, ts))

    out3 = pl.pallas_call(
        _pwise_mxu_kernel,
        out_shape=jax.ShapeDtypeStruct((n, k, s_pad), x3.dtype),
        grid_spec=pltpu.PrefetchScalarGridSpec(
            num_scalar_prefetch=0,
            grid=grid,
            in_specs=[
                pl.BlockSpec((None, cin, ts), lambda ni, si: (ni, 0, si)),
                pl.BlockSpec((k, cin), lambda ni, si: (0, 0)),   # weights in VMEM
                pl.BlockSpec((k, 1), lambda ni, si: (0, 0)),     # bias in VMEM
            ],
            out_specs=pl.BlockSpec((None, k, ts), lambda ni, si: (ni, 0, si)),
        ),
        compiler_params=pltpu.CompilerParams(
            dimension_semantics=("parallel", "parallel"),
            vmem_limit_bytes=32 * 1024 * 1024,
        ),
    )(x3, w.astype(jnp.float32), b.astype(jnp.float32).reshape(k, 1))
    return out3


def pointwise_conv3d(x, w, b):
    """1x1x1 Conv3d.  x: (N, Cin, D, H, W), w: (K, Cin), b: (K,) -> (N, K, D, H, W)."""
    n, cin, d, h, wd = x.shape
    k = w.shape[0]
    s = d * h * wd
    x3 = x.reshape(n, cin, s)                       # contiguous reshape
    s_pad = _round_up(s, 128)                       # lane-align the spatial axis
    if s_pad != s:
        x3 = jnp.pad(x3, ((0, 0), (0, 0), (0, s_pad - s)))

    if cin * k >= 512:                              # realistic channel counts
        out3 = _pwise_mxu(x3, w, b, n, cin, k, s_pad)
    else:                                           # tiny channel mix -> VPU
        out3 = _pwise_vpu(x3, w, b, n, cin, k, s_pad)

    if s_pad != s:
        out3 = out3[:, :, :s]
    return out3.reshape(n, k, d, h, wd)


# ---------------- module ----------------

class Pwise:
    """JAX/Pallas port of U2net3d.pwise (pointwise Conv3d)."""

    def __init__(self, inChans, outChans, key, kernel_size=1, stride=1, padding=0):
        # TODO(synk): only the pointwise configuration (kernel_size=1, stride=1,
        # padding=0 — the module's defaults) is implemented as a Pallas kernel.
        assert kernel_size == 1 and stride == 1 and padding == 0
        kw, kb = jax.random.split(key)
        bound = 1.0 / jnp.sqrt(jnp.float32(inChans * kernel_size ** 3))
        self.w = jax.random.uniform(kw, (outChans, inChans), jnp.float32, -bound, bound)
        self.b = jax.random.uniform(kb, (outChans,), jnp.float32, -bound, bound)
        self.inChans, self.outChans = inChans, outChans

    def __call__(self, x):
        return pointwise_conv3d(x, self.w, self.b)


# ---------------- demo / self-check ----------------

if __name__ == "__main__":
    key = jax.random.PRNGKey(0)
    k1, k2, k3, k4, k5 = jax.random.split(key, 5)

    def ref_pwise(x, w, b):
        # Exact f32 reference (VPU broadcast + sum; no MXU precision ambiguity).
        xf = x.astype(jnp.float32)
        prod = xf[:, None] * w[None, :, :, None, None, None]
        return prod.sum(axis=2) + b[None, :, None, None, None]

    # --- small-channel (VPU / SMEM-weights) path ---
    N, Cin, K = 2, 4, 3
    D = H = W = 16
    x = jax.random.normal(k2, (N, Cin, D, H, W), jnp.float32)
    mod = Pwise(Cin, K, k1)
    out = jax.block_until_ready(mod(x))
    ref = ref_pwise(x, mod.w, mod.b)
    assert out.shape == (N, K, D, H, W)
    assert jnp.allclose(out, ref, atol=1e-5, rtol=1e-5), "pwise (VPU path) mismatch"

    # --- ragged spatial size (S = 1000, padded to 1024 internally) ---
    xr = jax.random.normal(k3, (N, Cin, 10, 10, 10), jnp.float32)
    out_r = jax.block_until_ready(mod(xr))
    ref_r = ref_pwise(xr, mod.w, mod.b)
    assert jnp.allclose(out_r, ref_r, atol=1e-5, rtol=1e-5), "pwise (ragged) mismatch"

    # --- realistic channel counts (MXU path, weights in VMEM) ---
    Cin2 = K2 = 32
    mod2 = Pwise(Cin2, K2, k4)
    x2 = jax.random.normal(k5, (1, Cin2, 8, 8, 8), jnp.float32)
    out2 = jax.block_until_ready(mod2(x2))
    ref2 = ref_pwise(x2, mod2.w, mod2.b)
    assert out2.shape == (1, K2, 8, 8, 8)
    assert jnp.allclose(out2, ref2, atol=2e-2, rtol=2e-2), "pwise (MXU path) mismatch"

    print("KERNEL_OK")
</pallas_src>

<mosaic_0001>
module attributes {stable_mosaic.version = 11 : i64} {
  func.func @_pwise_vpu_kernel(%arg0: i32, %arg1: i32, %arg2: memref<1x4x32x128xf32, #tpu.memory_space<vmem>>, %arg3: memref<12xf32, #tpu.memory_space<smem>>, %arg4: memref<3xf32, #tpu.memory_space<smem>>, %arg5: memref<1x3x32x128xf32, #tpu.memory_space<vmem>>) attributes {dimension_semantics = [#tpu.dimension_semantics<parallel>, #tpu.dimension_semantics<parallel>], iteration_bounds = array<i64: 2, 1>, scalar_prefetch = 0 : i64, scratch_operands = 0 : i64, tpu.core_type = #tpu.core_type<tc>, window_params = [{transform_indices = @transform_0, window_bounds = array<i64: 1, 4, 32, 128>}, {transform_indices = @transform_1, window_bounds = array<i64: 12>}, {transform_indices = @transform_2, window_bounds = array<i64: 3>}, {transform_indices = @transform_3, window_bounds = array<i64: 1, 3, 32, 128>}]} {
    %c0 = arith.constant 0 : index
    %0 = memref.load %arg3[%c0] : memref<12xf32, #tpu.memory_space<smem>>
    %c1 = arith.constant 1 : index
    %1 = memref.load %arg3[%c1] : memref<12xf32, #tpu.memory_space<smem>>
    %c2 = arith.constant 2 : index
    %2 = memref.load %arg3[%c2] : memref<12xf32, #tpu.memory_space<smem>>
    %c3 = arith.constant 3 : index
    %3 = memref.load %arg3[%c3] : memref<12xf32, #tpu.memory_space<smem>>
    %c4 = arith.constant 4 : index
    %4 = memref.load %arg3[%c4] : memref<12xf32, #tpu.memory_space<smem>>
    %c5 = arith.constant 5 : index
    %5 = memref.load %arg3[%c5] : memref<12xf32, #tpu.memory_space<smem>>
    %c6 = arith.constant 6 : index
    %6 = memref.load %arg3[%c6] : memref<12xf32, #tpu.memory_space<smem>>
    %c7 = arith.constant 7 : index
    %7 = memref.load %arg3[%c7] : memref<12xf32, #tpu.memory_space<smem>>
    %c8 = arith.constant 8 : index
    %8 = memref.load %arg3[%c8] : memref<12xf32, #tpu.memory_space<smem>>
    %c9 = arith.constant 9 : index
    %9 = memref.load %arg3[%c9] : memref<12xf32, #tpu.memory_space<smem>>
    %c10 = arith.constant 10 : index
    %10 = memref.load %arg3[%c10] : memref<12xf32, #tpu.memory_space<smem>>
    %c11 = arith.constant 11 : index
    %11 = memref.load %arg3[%c11] : memref<12xf32, #tpu.memory_space<smem>>
    %c0_0 = arith.constant 0 : index
    %12 = memref.load %arg4[%c0_0] : memref<3xf32, #tpu.memory_space<smem>>
    %c1_1 = arith.constant 1 : index
    %13 = memref.load %arg4[%c1_1] : memref<3xf32, #tpu.memory_space<smem>>
    %c2_2 = arith.constant 2 : index
    %14 = memref.load %arg4[%c2_2] : memref<3xf32, #tpu.memory_space<smem>>
    %c0_i32 = arith.constant 0 : i32
    %c32_i32 = arith.constant 32 : i32
    %15 = arith.muli %c0_i32, %c32_i32 : i32
    %16 = tpu.assume_multiple %15, 32 : i32
    %c0_3 = arith.constant 0 : index
    %c0_4 = arith.constant 0 : index
    %17 = arith.index_cast %16 : i32 to index
    %c0_5 = arith.constant 0 : index
    %18 = vector.load %arg2[%c0_3, %c0_4, %17, %c0_5] : memref<1x4x32x128xf32, #tpu.memory_space<vmem>>, vector<1x1x32x128xf32>
    %19 = vector.shape_cast %18 : vector<1x1x32x128xf32> to vector<32x128xf32>
    %c0_6 = arith.constant 0 : index
    %c1_7 = arith.constant 1 : index
    %20 = arith.index_cast %16 : i32 to index
    %c0_8 = arith.constant 0 : index
    %21 = vector.load %arg2[%c0_6, %c1_7, %20, %c0_8] : memref<1x4x32x128xf32, #tpu.memory_space<vmem>>, vector<1x1x32x128xf32>
    %22 = vector.shape_cast %21 : vector<1x1x32x128xf32> to vector<32x128xf32>
    %c0_9 = arith.constant 0 : index
    %c2_10 = arith.constant 2 : index
    %23 = arith.index_cast %16 : i32 to index
    %c0_11 = arith.constant 0 : index
    %24 = vector.load %arg2[%c0_9, %c2_10, %23, %c0_11] : memref<1x4x32x128xf32, #tpu.memory_space<vmem>>, vector<1x1x32x128xf32>
    %25 = vector.shape_cast %24 : vector<1x1x32x128xf32> to vector<32x128xf32>
    %c0_12 = arith.constant 0 : index
    %c3_13 = arith.constant 3 : index
    %26 = arith.index_cast %16 : i32 to index
    %c0_14 = arith.constant 0 : index
    %27 = vector.load %arg2[%c0_12, %c3_13, %26, %c0_14] : memref<1x4x32x128xf32, #tpu.memory_space<vmem>>, vector<1x1x32x128xf32>
    %28 = vector.shape_cast %27 : vector<1x1x32x128xf32> to vector<32x128xf32>
    %29 = vector.broadcast %0 : f32 to vector<32x128xf32>
    %30 = arith.mulf %19, %29 : vector<32x128xf32>
    %31 = vector.broadcast %1 : f32 to vector<32x128xf32>
    %32 = arith.mulf %22, %31 : vector<32x128xf32>
    %33 = arith.addf %30, %32 : vector<32x128xf32>
    %34 = vector.broadcast %2 : f32 to vector<32x128xf32>
    %35 = arith.mulf %25, %34 : vector<32x128xf32>
    %36 = arith.addf %33, %35 : vector<32x128xf32>
    %37 = vector.broadcast %3 : f32 to vector<32x128xf32>
    %38 = arith.mulf %28, %37 : vector<32x128xf32>
    %39 = arith.addf %36, %38 : vector<32x128xf32>
    %40 = vector.broadcast %12 : f32 to vector<32x128xf32>
    %41 = arith.addf %39, %40 : vector<32x128xf32>
    %c0_15 = arith.constant 0 : index
    %c0_16 = arith.constant 0 : index
    %42 = arith.index_cast %16 : i32 to index
    %c0_17 = arith.constant 0 : index
    %43 = vector.load %arg5[%c0_15, %c0_16, %42, %c0_17] : memref<1x3x32x128xf32, #tpu.memory_space<vmem>>, vector<1x1x32x128xf32>
    %44 = vector.shape_cast %43 : vector<1x1x32x128xf32> to vector<32x128xf32>
    %45 = vector.shape_cast %41 : vector<32x128xf32> to vector<1x1x32x128xf32>
    tpu.vector_store %arg5[%c0_15, %c0_16, %42, %c0_17], %45 {strides = array<i32>} : memref<1x3x32x128xf32, #tpu.memory_space<vmem>>, vector<1x1x32x128xf32>,
    %46 = vector.broadcast %4 : f32 to vector<32x128xf32>
    %47 = arith.mulf %19, %46 : vector<32x128xf32>
    %48 = vector.broadcast %5 : f32 to vector<32x128xf32>
    %49 = arith.mulf %22, %48 : vector<32x128xf32>
    %50 = arith.addf %47, %49 : vector<32x128xf32>
    %51 = vector.broadcast %6 : f32 to vector<32x128xf32>
    %52 = arith.mulf %25, %51 : vector<32x128xf32>
    %53 = arith.addf %50, %52 : vector<32x128xf32>
    %54 = vector.broadcast %7 : f32 to vector<32x128xf32>
    %55 = arith.mulf %28, %54 : vector<32x128xf32>
    %56 = arith.addf %53, %55 : vector<32x128xf32>
    %57 = vector.broadcast %13 : f32 to vector<32x128xf32>
    %58 = arith.addf %56, %57 : vector<32x128xf32>
    %c0_18 = arith.constant 0 : index
    %c1_19 = arith.constant 1 : index
    %59 = arith.index_cast %16 : i32 to index
    %c0_20 = arith.constant 0 : index
    %60 = vector.load %arg5[%c0_18, %c1_19, %59, %c0_20] : memref<1x3x32x128xf32, #tpu.memory_space<vmem>>, vector<1x1x32x128xf32>
    %61 = vector.shape_cast %60 : vector<1x1x32x128xf32> to vector<32x128xf32>
    %62 = vector.shape_cast %58 : vector<32x128xf32> to vector<1x1x32x128xf32>
    tpu.vector_store %arg5[%c0_18, %c1_19, %59, %c0_20], %62 {strides = array<i32>} : memref<1x3x32x128xf32, #tpu.memory_space<vmem>>, vector<1x1x32x128xf32>,
    %63 = vector.broadcast %8 : f32 to vector<32x128xf32>
    %64 = arith.mulf %19, %63 : vector<32x128xf32>
    %65 = vector.broadcast %9 : f32 to vector<32x128xf32>
    %66 = arith.mulf %22, %65 : vector<32x128xf32>
    %67 = arith.addf %64, %66 : vector<32x128xf32>
    %68 = vector.broadcast %10 : f32 to vector<32x128xf32>
    %69 = arith.mulf %25, %68 : vector<32x128xf32>
    %70 = arith.addf %67, %69 : vector<32x128xf32>
    %71 = vector.broadcast %11 : f32 to vector<32x128xf32>
    %72 = arith.mulf %28, %71 : vector<32x128xf32>
    %73 = arith.addf %70, %72 : vector<32x128xf32>
    %74 = vector.broadcast %14 : f32 to vector<32x128xf32>
    %75 = arith.addf %73, %74 : vector<32x128xf32>
    %c0_21 = arith.constant 0 : index
    %c2_22 = arith.constant 2 : index
    %76 = arith.index_cast %16 : i32 to index
    %c0_23 = arith.constant 0 : index
    %77 = vector.load %arg5[%c0_21, %c2_22, %76, %c0_23] : memref<1x3x32x128xf32, #tpu.memory_space<vmem>>, vector<1x1x32x128xf32>
    %78 = vector.shape_cast %77 : vector<1x1x32x128xf32> to vector<32x128xf32>
    %79 = vector.shape_cast %75 : vector<32x128xf32> to vector<1x1x32x128xf32>
    tpu.vector_store %arg5[%c0_21, %c2_22, %76, %c0_23], %79 {strides = array<i32>} : memref<1x3x32x128xf32, #tpu.memory_space<vmem>>, vector<1x1x32x128xf32>,
    %c1_i32 = arith.constant 1 : i32
    return
  }
  func.func @transform_0(%arg0: i32, %arg1: i32) -> (i32, i32, i32, i32) {
    %c0_i32 = arith.constant 0 : i32
    %c0_i32_0 = arith.constant 0 : i32
    %c0_i32_1 = arith.constant 0 : i32
    return %arg0, %c0_i32, %arg1, %c0_i32_0 : i32, i32, i32, i32
  }
  func.func @transform_1(%arg0: i32, %arg1: i32) -> i32 {
    %c0_i32 = arith.constant 0 : i32
    %c0_i32_0 = arith.constant 0 : i32
    return %c0_i32 : i32
  }
  func.func @transform_2(%arg0: i32, %arg1: i32) -> i32 {
    %c0_i32 = arith.constant 0 : i32
    %c0_i32_0 = arith.constant 0 : i32
    return %c0_i32 : i32
  }
  func.func @transform_3(%arg0: i32, %arg1: i32) -> (i32, i32, i32, i32) {
    %c0_i32 = arith.constant 0 : i32
    %c0_i32_0 = arith.constant 0 : i32
    %c0_i32_1 = arith.constant 0 : i32
    return %arg0, %c0_i32, %arg1, %c0_i32_0 : i32, i32, i32, i32
  }
}

</mosaic_0001>

<llo_original>
// kernel: tpu_custom_call.1
$region0: #{tpu_custom_call.1}
  #allocation0 [shape = 'u32[]', space=smem, size = 0x4, offset = 0x4, fixed_abs, tag = 'smem constant byte address 0x4 - core index']
  #allocation1 [shape = 'u32[144,128]{1,0:T(1,128)}', space=vmem, size = 0x12000, scoped, tag = 'internal scratch']
  %s0 = inlined_call_operand.hbm [shape: f32[2,4,32,128], index: 0, kind: input, shape index: {}]
  %s1 = inlined_call_operand.vmem [shape: f32[12], index: 1, kind: input, shape index: {}]
  %s2 = inlined_call_operand.vmem [shape: f32[3], index: 2, kind: input, shape index: {}]
  %s3 = inlined_call_operand.hbm [shape: f32[2,3,32,128], index: 3, kind: output, shape index: {}]
  %s4 = sld [smem:[#allocation0]]
  $region57: #{tpu_custom_call.1} parent=0
    _
  %s6 = ssub.s32 1, %s4
  %s7 = scalar_select 0, %s6, %s4
  $region1: #{tpu_custom_call.1} parent=0
    #allocation2 [shape = 'u8[131072]{0}', space=vmem, size = 0x20000, scoped, tag = 'input window, operand 0']
    #allocation3 [shape = 's32[2]{0}', space=sflag, size = 0x8, scoped, tag = 'scoped memory for tpu_custom_call.1']
    #allocation4 [shape = 's32[2]{0}', space=sflag, size = 0x8, scoped, tag = 'scoped memory for tpu_custom_call.1']
    #allocation5 [shape = 's32[2]{0}', space=sflag, size = 0x8, scoped, tag = 'scoped memory for tpu_custom_call.1']
    #allocation6 [shape = 'u8[512]{0}', space=smem, size = 0x200, scoped, tag = 'input window, operand 1, single buffered']
    #allocation7 [shape = 'u8[512]{0}', space=smem, size = 0x200, scoped, tag = 'input window, operand 2, single buffered']
    #allocation8 [shape = 's32[1]{0}', space=sflag, size = 0x4, scoped, tag = 'scoped memory for tpu_custom_call.1']
    #allocation9 [shape = 'u8[98304]{0}', space=vmem, size = 0x18000, scoped, tag = 'output window, operand 0']
    %8 = vsyncpa [#allocation3], 0
    %s9 = scalar_lea.sflag [#allocation3], 1
    %10 = vsyncpa %s9, 0
    %11 = vsyncpa [#allocation5], 0
    %12 = vsyncpa [#allocation8], 0
    %13 = vsyncpa [#allocation4], 0
    %s14 = scalar_lea.sflag [#allocation4], 1
    %15 = vsyncpa %s14, 0
    loop: start=0, step=1, limit=4
    $region2: #{tpu_custom_call.1} parent=1 // loop_pre_header
      _
    $region3: #{tpu_custom_call.1} parent=1 // loop_header
      %s17 = sphi 0, %s21
      %p18 = scmp.ge.s32.totalorder %s17, 4
      %s24 = sphi 0, %s36
      %s25 = sphi 0, %s32
      %s26 = sphi 0, %s24
      %s27 = sphi 0, %s25
      %s28 = sphi 0, %s26
      %s29 = sphi 0, %s27
      %s41 = sphi 0, %s43
      %s44 = sphi 0, %s41
      %s45 = sphi 0, %s44
      %s61 = sphi 0, %s45
      %s65 = sphi 0, %s65
      %s67 = sphi 0, %s65
      %s68 = sphi 0, %s67
      %s82 = sphi 0, %s68
      %s86 = sphi 0, %s86
      %s88 = sphi 0, %s86
      %s89 = sphi 0, %s88
      %s103 = sphi 0, %s89
      %s111 = sphi 0, %s113
      %s114 = sphi 0, %s111
      %s115 = sphi 0, %s114
      %s131 = sphi 0, %s115
    $region4: #{tpu_custom_call.1} parent=1 // loop_header_branch
      %20 = sbr.rel (%p18) target = $region8
    $region5: #{tpu_custom_call.1} parent=1 // loop_body
      %s22 = ssub.s32 %s17, 1
      %s23 = ssub.s32 %s17, 2
      %s30 = sadd.s32 1, %s25
      %p31 = scmp.ge.s32.totalorder %s30, 1
      %s32 = scalar_select %p31, 0, %s30
      %s33 = sadd.s32 1, %s24
      %s34 = scalar_select %p31, %s33, %s24
      %p35 = scmp.ge.s32.totalorder %s34, 2
      %s36 = scalar_select %p35, 0, %s34
      %s37 = ssub.s32 %s24, %s36
      %s38 = ssub.s32 %s25, %s32
      %s39 = sor.u32 %s37, %s38
      %p40 = scmp.eq.s32.totalorder %s39, 0
      %s42 = sadd.s32 %s41, 1
      %s43 = scalar_select %p40, %s41, %s42
      %p46 = pneg %p40
      %p47 = scmp.eq.s32.totalorder %s17, 1
      %p48 = por %p46, %p47
      %p49 = scmp.ne.s32.totalorder %s41, %s44
      %p50 = scmp.eq.s32.totalorder %s17, 0
      %p51 = por %p49, %p50
      %p52 = scmp.ne.s32.totalorder %s41, %s44
      %p53 = scmp.eq.s32.totalorder %s22, 1
      %p54 = por %p52, %p53
      %p55 = scmp.ne.s32.totalorder %s44, %s45
      %p56 = scmp.eq.s32.totalorder %s22, 0
      %p57 = por %p55, %p56
      %p58 = scmp.ne.s32.totalorder %s44, %s45
      %p59 = scmp.eq.s32.totalorder %s23, 1
      %p60 = por %p58, %p59
      %p62 = scmp.ne.s32.totalorder %s45, %s61
      %p63 = scmp.eq.s32.totalorder %s23, 0
      %p64 = por %p62, %p63
      %s66 = sadd.s32 %s65, 1
      %p69 = scmp.eq.s32.totalorder %s17, 1
      %p70 = scmp.ne.s32.totalorder %s65, %s67
      %p71 = scmp.eq.s32.totalorder %s17, 0
      %p72 = por %p70, %p71
      %p73 = scmp.ne.s32.totalorder %s65, %s67
      %p74 = scmp.eq.s32.totalorder %s22, 1
      %p75 = por %p73, %p74
      %p76 = scmp.ne.s32.totalorder %s67, %s68
      %p77 = scmp.eq.s32.totalorder %s22, 0
      %p78 = por %p76, %p77
      %p79 = scmp.ne.s32.totalorder %s67, %s68
      %p80 = scmp.eq.s32.totalorder %s23, 1
      %p81 = por %p79, %p80
      %p83 = scmp.ne.s32.totalorder %s68, %s82
      %p84 = scmp.eq.s32.totalorder %s23, 0
      %p85 = por %p83, %p84
      %s87 = sadd.s32 %s86, 1
      %p90 = scmp.eq.s32.totalorder %s17, 1
      %p91 = scmp.ne.s32.totalorder %s86, %s88
      %p92 = scmp.eq.s32.totalorder %s17, 0
      %p93 = por %p91, %p92
      %p94 = scmp.ne.s32.totalorder %s86, %s88
      %p95 = scmp.eq.s32.totalorder %s22, 1
      %p96 = por %p94, %p95
      %p97 = scmp.ne.s32.totalorder %s88, %s89
      %p98 = scmp.eq.s32.totalorder %s22, 0
      %p99 = por %p97, %p98
      %p100 = scmp.ne.s32.totalorder %s88, %s89
      %p101 = scmp.eq.s32.totalorder %s23, 1
      %p102 = por %p100, %p101
      %p104 = scmp.ne.s32.totalorder %s89, %s103
      %p105 = scmp.eq.s32.totalorder %s23, 0
      %p106 = por %p104, %p105
      %s107 = ssub.s32 %s24, %s36
      %s108 = ssub.s32 %s25, %s32
      %s109 = sor.u32 %s107, %s108
      %p110 = scmp.eq.s32.totalorder %s109, 0
      %s112 = sadd.s32 %s111, 1
      %s113 = scalar_select %p110, %s111, %s112
      %p116 = pneg %p110
      %p117 = scmp.eq.s32.totalorder %s17, 1
      %p118 = por %p116, %p117
      %p119 = scmp.ne.s32.totalorder %s111, %s114
      %p120 = scmp.eq.s32.totalorder %s17, 0
      %p121 = por %p119, %p120
      %p122 = scmp.ne.s32.totalorder %s111, %s114
      %p123 = scmp.eq.s32.totalorder %s22, 1
      %p124 = por %p122, %p123
      %p125 = scmp.ne.s32.totalorder %s114, %s115
      %p126 = scmp.eq.s32.totalorder %s22, 0
      %p127 = por %p125, %p126
      %p128 = scmp.ne.s32.totalorder %s114, %s115
      %p129 = scmp.eq.s32.totalorder %s23, 1
      %p130 = por %p128, %p129
      %p132 = scmp.ne.s32.totalorder %s115, %s131
      %p133 = scmp.eq.s32.totalorder %s23, 0
      %p134 = por %p132, %p133
      %p135 = scmp.le.s32.totalorder 1, %s17
      %p136 = scmp.lt.s32.totalorder %s17, 3
      %p137 = pnand %p135, %p136
      %p138 = pneg %p137
      // Predicated region
      $region9: #{tpu_custom_call.1} parent=5 // pred_check
        _
      $region10: #{tpu_custom_call.1} parent=5 // pred_check_branch
        %140 = sbr.rel (%p137) target = $region12
      $region11: #{tpu_custom_call.1} parent=5 // pred_region
        %s141 = ssub.s32 %s17, 1
        // Predicated region
        $region13: #{tpu_custom_call.1} parent=11 // pred_check
          %p142 = pneg %p78
        $region14: #{tpu_custom_call.1} parent=11 // pred_check_branch
          %144 = sbr.rel (%p142) target = $region16
        $region15: #{tpu_custom_call.1} parent=11 // pred_region
          %s146 = ssub.s32 16, 16
          %147 = vsyncadd [#allocation5], %s146
          %s149 = sshll.u32 %s1, 4
          %s150 = int_to_ptr.vmem [resolvable:$true] %s149
          %152 = dma.vmem_to_smem %s150, 16, [#allocation6], [#allocation5]
        $region16: #{tpu_custom_call.1} parent=11 // pred_fallthru
          _
        // Predicated region
        $region17: #{tpu_custom_call.1} parent=11 // pred_check
          %p153 = pneg %p99
        $region18: #{tpu_custom_call.1} parent=11 // pred_check_branch
          %155 = sbr.rel (%p153) target = $region20
        $region19: #{tpu_custom_call.1} parent=11 // pred_region
          %s157 = ssub.s32 16, 16
          %158 = vsyncadd [#allocation8], %s157
          %s160 = sshll.u32 %s2, 4
          %s161 = int_to_ptr.vmem [resolvable:$true] %s160
          %163 = dma.vmem_to_smem %s161, 16, [#allocation7], [#allocation8]
        $region20: #{tpu_custom_call.1} parent=11 // pred_fallthru
          _
      $region12: #{tpu_custom_call.1} parent=5 // pred_fallthru
        _
      %p164 = scmp.lt.s32.totalorder %s17, 2
      // Predicated region
      $region21: #{tpu_custom_call.1} parent=5 // pred_check
        %p165 = pneg %p164
      $region22: #{tpu_custom_call.1} parent=5 // pred_check_branch
        %167 = sbr.rel (%p165) target = $region24
      $region23: #{tpu_custom_call.1} parent=5 // pred_region
        // Predicated region
        $region25: #{tpu_custom_call.1} parent=23 // pred_check
          %p168 = pneg %p51
        $region26: #{tpu_custom_call.1} parent=23 // pred_check_branch
          %170 = sbr.rel (%p168) target = $region28
        $region27: #{tpu_custom_call.1} parent=23 // pred_region
          %s171 = sand.u32 %s41, 1
          %s172 = scalar_lea.sflag [#allocation3], %s171
          %s173 = sand.u32 %s41, 1
          %s174 = smul.addr %s173, 128
          %s175 = scalar_lea.vmem [#allocation2], %s174
          %s176 = smul.u32 4, %s25
          %s178 = ssub.s32 2048, 2048
          %179 = vsyncadd %s172, %s178
          %s180 = smul.addr %s24, 16
          %s181 = sadd.s32 %s176, %s180
          %s182 = smul.addr %s181, 128
          %s183 = scalar_lea.hbm %s0, %s182
          %s184 = sshll.u32 %s175, 4
          %s185 = int_to_ptr.vmem [resolvable:$true] %s184
          %190 = dma.hbm_to_vmem [thread:$0]  %s183, 2048, %s185, %s172, 128, 128, 8
        $region28: #{tpu_custom_call.1} parent=23 // pred_fallthru
          _
      $region24: #{tpu_custom_call.1} parent=5 // pred_fallthru
        _
      %p191 = scmp.le.s32.totalorder 1, %s17
      %p192 = scmp.lt.s32.totalorder %s17, 3
      %p193 = pnand %p191, %p192
      %p194 = pneg %p193
      // Predicated region
      $region29: #{tpu_custom_call.1} parent=5 // pred_check
        _
      $region30: #{tpu_custom_call.1} parent=5 // pred_check_branch
        %196 = sbr.rel (%p193) target = $region32
      $region31: #{tpu_custom_call.1} parent=5 // pred_region
        %s197 = ssub.s32 %s17, 1
        %s198 = sand.u32 %s44, 1
        %s199 = scalar_lea.sflag [#allocation3], %s198
        %s200 = sand.u32 %s44, 1
        %s201 = smul.addr %s200, 128
        %s202 = scalar_lea.vmem [#allocation2], %s201
        // Predicated region
        $region33: #{tpu_custom_call.1} parent=31 // pred_check
          %p203 = pneg %p57
        $region34: #{tpu_custom_call.1} parent=31 // pred_check_branch
          %205 = sbr.rel (%p203) target = $region36
        $region35: #{tpu_custom_call.1} parent=31 // pred_region
          %206 = dma.done %s199, 2048
        $region36: #{tpu_custom_call.1} parent=31 // pred_fallthru
          _
        // Predicated region
        $region37: #{tpu_custom_call.1} parent=31 // pred_check
          %p207 = pneg %p78
        $region38: #{tpu_custom_call.1} parent=31 // pred_check_branch
          %209 = sbr.rel (%p207) target = $region40
        $region39: #{tpu_custom_call.1} parent=31 // pred_region
          %210 = dma.done [#allocation5], 16
        $region40: #{tpu_custom_call.1} parent=31 // pred_fallthru
          _
        // Predicated region
        $region41: #{tpu_custom_call.1} parent=31 // pred_check
          %p211 = pneg %p99
        $region42: #{tpu_custom_call.1} parent=31 // pred_check_branch
          %213 = sbr.rel (%p211) target = $region44
        $region43: #{tpu_custom_call.1} parent=31 // pred_region
          %214 = dma.done [#allocation8], 16
        $region44: #{tpu_custom_call.1} parent=31 // pred_fallthru
          _
        %215 = sfence
        %s216 = sand.u32 %s44, 1
        %s217 = scalar_lea.sflag [#allocation3], %s216
        %s218 = sand.u32 %s44, 1
        %s219 = smul.addr %s218, 128
        %s220 = scalar_lea.vmem [#allocation2], %s219
        %p221 = pneg %p57
        %p222 = pneg %p54
        %p223 = pneg %p78
        %p224 = pneg %p75
        %p225 = pneg %p99
        %p226 = pneg %p96
        %p227 = pneg %p127
        %p228 = pneg %p124
        %s229 = sand.u32 %s114, 1
        %s230 = scalar_lea.sflag [#allocation4], %s229
        %s231 = sand.u32 %s114, 1
        %s232 = smul.addr %s231, 96
        %s233 = scalar_lea.vmem [#allocation9], %s232
        %s234 = smul.u32 4, %s27
        %s235 = smul.u32 4, %s27
        %s236 = sld [smem:[#allocation6]]
        %s237 = sld [smem:[#allocation6 + $0x1]]
        %s238 = sld [smem:[#allocation6 + $0x2]]
        %s239 = sld [smem:[#allocation6 + $0x3]]
        %s240 = sld [smem:[#allocation6 + $0x4]]
        %s241 = sld [smem:[#allocation6 + $0x5]]
        %s242 = sld [smem:[#allocation6 + $0x6]]
        %s243 = sld [smem:[#allocation6 + $0x7]]
        %s244 = sld [smem:[#allocation6 + $0x8]]
        %s245 = sld [smem:[#allocation6 + $0x9]]
        %s246 = sld [smem:[#allocation6 + $0xa]]
        %s247 = sld [smem:[#allocation6 + $0xb]]
        %s248 = sld [smem:[#allocation7]]
        %s249 = sld [smem:[#allocation7 + $0x1]]
        %s250 = sld [smem:[#allocation7 + $0x2]]
        %v251 = vld [vmem:[%s202] sm:$0xff]
        %v252 = vld [vmem:[%s202 + $0x8] sm:$0xff]
        %v253 = vld [vmem:[%s202 + $0x10] sm:$0xff]
        %v254 = vld [vmem:[%s202 + $0x18] sm:$0xff]
        %s255 = sadd.s32 0, 32
        %s256 = scalar_lea.vmem %s202, %s255 [#allocation2]
        %v257 = vld [vmem:[%s256] sm:$0xff]
        %v258 = vld [vmem:[%s256 + $0x8] sm:$0xff]
        %v259 = vld [vmem:[%s256 + $0x10] sm:$0xff]
        %v260 = vld [vmem:[%s256 + $0x18] sm:$0xff]
        %s261 = sadd.s32 0, 64
        %s262 = scalar_lea.vmem %s202, %s261 [#allocation2]
        %v263 = vld [vmem:[%s262] sm:$0xff]
        %v264 = vld [vmem:[%s262 + $0x8] sm:$0xff]
        %v265 = vld [vmem:[%s262 + $0x10] sm:$0xff]
        %v266 = vld [vmem:[%s262 + $0x18] sm:$0xff]
        %s267 = sadd.s32 0, 96
        %s268 = scalar_lea.vmem %s202, %s267 [#allocation2]
        %v269 = vld [vmem:[%s268] sm:$0xff]
        %v270 = vld [vmem:[%s268 + $0x8] sm:$0xff]
        %v271 = vld [vmem:[%s268 + $0x10] sm:$0xff]
        %v272 = vld [vmem:[%s268 + $0x18] sm:$0xff]
        %v273 = vstv %s236
        %v274 = vmul.f32 %v251, %v273
        %v275 = vmul.f32 %v252, %v273
        %v276 = vmul.f32 %v253, %v273
        %v277 = vmul.f32 %v254, %v273
        %v278 = vstv %s237
        %v279 = vmul.f32 %v257, %v278
        %v280 = vmul.f32 %v258, %v278
        %v281 = vmul.f32 %v259, %v278
        %v282 = vmul.f32 %v260, %v278
        %v283 = vadd.f32 %v274, %v279
        %v284 = vadd.f32 %v275, %v280
        %v285 = vadd.f32 %v276, %v281
        %v286 = vadd.f32 %v277, %v282
        %v287 = vstv %s238
        %v288 = vmul.f32 %v263, %v287
        %v289 = vmul.f32 %v264, %v287
        %v290 = vmul.f32 %v265, %v287
        %v291 = vmul.f32 %v266, %v287
        %v292 = vadd.f32 %v283, %v288
        %v293 = vadd.f32 %v284, %v289
        %v294 = vadd.f32 %v285, %v290
        %v295 = vadd.f32 %v286, %v291
        %v296 = vstv %s239
        %v297 = vmul.f32 %v269, %v296
        %v298 = vmul.f32 %v270, %v296
        %v299 = vmul.f32 %v271, %v296
        %v300 = vmul.f32 %v272, %v296
        %v301 = vadd.f32 %v292, %v297
        %v302 = vadd.f32 %v293, %v298
        %v303 = vadd.f32 %v294, %v299
        %v304 = vadd.f32 %v295, %v300
        %v305 = vstv %s248
        %v306 = vadd.f32 %v301, %v305
        %v307 = vadd.f32 %v302, %v305
        %v308 = vadd.f32 %v303, %v305
        %v309 = vadd.f32 %v304, %v305
        %310 = vst [vmem:[%s233] sm:$0xff] %v306
        %311 = vst [vmem:[%s233 + $0x8] sm:$0xff] %v307
        %312 = vst [vmem:[%s233 + $0x10] sm:$0xff] %v308
        %313 = vst [vmem:[%s233 + $0x18] sm:$0xff] %v309
        %v314 = vstv %s240
        %v315 = vmul.f32 %v251, %v314
        %v316 = vmul.f32 %v252, %v314
        %v317 = vmul.f32 %v253, %v314
        %v318 = vmul.f32 %v254, %v314
        %v319 = vstv %s241
        %v320 = vmul.f32 %v257, %v319
        %v321 = vmul.f32 %v258, %v319
        %v322 = vmul.f32 %v259, %v319
        %v323 = vmul.f32 %v260, %v319
        %v324 = vadd.f32 %v315, %v320
        %v325 = vadd.f32 %v316, %v321
        %v326 = vadd.f32 %v317, %v322
        %v327 = vadd.f32 %v318, %v323
        %v328 = vstv %s242
        %v329 = vmul.f32 %v263, %v328
        %v330 = vmul.f32 %v264, %v328
        %v331 = vmul.f32 %v265, %v328
        %v332 = vmul.f32 %v266, %v328
        %v333 = vadd.f32 %v324, %v329
        %v334 = vadd.f32 %v325, %v330
        %v335 = vadd.f32 %v326, %v331
        %v336 = vadd.f32 %v327, %v332
        %v337 = vstv %s243
        %v338 = vmul.f32 %v269, %v337
        %v339 = vmul.f32 %v270, %v337
        %v340 = vmul.f32 %v271, %v337
        %v341 = vmul.f32 %v272, %v337
        %v342 = vadd.f32 %v333, %v338
        %v343 = vadd.f32 %v334, %v339
        %v344 = vadd.f32 %v335, %v340
        %v345 = vadd.f32 %v336, %v341
        %v346 = vstv %s249
        %v347 = vadd.f32 %v342, %v346
        %v348 = vadd.f32 %v343, %v346
        %v349 = vadd.f32 %v344, %v346
        %v350 = vadd.f32 %v345, %v346
        %s351 = scalar_lea.vmem %s233, %s255 [#allocation9]
        %352 = vst [vmem:[%s351] sm:$0xff] %v347
        %353 = vst [vmem:[%s351 + $0x8] sm:$0xff] %v348
        %354 = vst [vmem:[%s351 + $0x10] sm:$0xff] %v349
        %355 = vst [vmem:[%s351 + $0x18] sm:$0xff] %v350
        %v356 = vstv %s244
        %v357 = vmul.f32 %v251, %v356
        %v358 = vmul.f32 %v252, %v356
        %v359 = vmul.f32 %v253, %v356
        %v360 = vmul.f32 %v254, %v356
        %v361 = vstv %s245
        %v362 = vmul.f32 %v257, %v361
        %v363 = vmul.f32 %v258, %v361
        %v364 = vmul.f32 %v259, %v361
        %v365 = vmul.f32 %v260, %v361
        %v366 = vadd.f32 %v357, %v362
        %v367 = vadd.f32 %v358, %v363
        %v368 = vadd.f32 %v359, %v364
        %v369 = vadd.f32 %v360, %v365
        %v370 = vstv %s246
        %v371 = vmul.f32 %v263, %v370
        %v372 = vmul.f32 %v264, %v370
        %v373 = vmul.f32 %v265, %v370
        %v374 = vmul.f32 %v266, %v370
        %v375 = vadd.f32 %v366, %v371
        %v376 = vadd.f32 %v367, %v372
        %v377 = vadd.f32 %v368, %v373
        %v378 = vadd.f32 %v369, %v374
        %v379 = vstv %s247
        %v380 = vmul.f32 %v269, %v379
        %v381 = vmul.f32 %v270, %v379
        %v382 = vmul.f32 %v271, %v379
        %v383 = vmul.f32 %v272, %v379
        %v384 = vadd.f32 %v375, %v380
        %v385 = vadd.f32 %v376, %v381
        %v386 = vadd.f32 %v377, %v382
        %v387 = vadd.f32 %v378, %v383
        %v388 = vstv %s250
        %v389 = vadd.f32 %v384, %v388
        %v390 = vadd.f32 %v385, %v388
        %v391 = vadd.f32 %v386, %v388
        %v392 = vadd.f32 %v387, %v388
        %s393 = scalar_lea.vmem %s233, %s261 [#allocation9]
        %394 = vst [vmem:[%s393] sm:$0xff] %v389
        %395 = vst [vmem:[%s393 + $0x8] sm:$0xff] %v390
        %396 = vst [vmem:[%s393 + $0x10] sm:$0xff] %v391
        %397 = vst [vmem:[%s393 + $0x18] sm:$0xff] %v392
        %s398 = sand.u32 %s114, 1
        %s399 = scalar_lea.sflag [#allocation4], %s398
        %s400 = sand.u32 %s114, 1
        %s401 = smul.addr %s400, 96
        %s402 = scalar_lea.vmem [#allocation9], %s401
        // Predicated region
        $region45: #{tpu_custom_call.1} parent=31 // pred_check
          %p403 = pneg %p124
        $region46: #{tpu_custom_call.1} parent=31 // pred_check_branch
          %405 = sbr.rel (%p403) target = $region48
        $region47: #{tpu_custom_call.1} parent=31 // pred_region
          %s406 = smul.u32 4, %s27
          %s408 = ssub.s32 1536, 1536
          %409 = vsyncadd %s399, %s408
          %s410 = smul.addr %s26, 12
          %s411 = sadd.s32 %s406, %s410
          %s412 = smul.addr %s411, 128
          %s413 = scalar_lea.hbm %s3, %s412
          %s414 = sshll.u32 %s402, 4
          %s415 = int_to_ptr.vmem [resolvable:$true] %s414
          %420 = dma.vmem_to_hbm [thread:$0]  %s415, 1536, %s413, %s399, 128, 128, 8
        $region48: #{tpu_custom_call.1} parent=31 // pred_fallthru
          _
      $region32: #{tpu_custom_call.1} parent=5 // pred_fallthru
        _
      %p421 = scmp.le.s32.totalorder 2, %s17
      // Predicated region
      $region49: #{tpu_custom_call.1} parent=5 // pred_check
        %p422 = pneg %p421
      $region50: #{tpu_custom_call.1} parent=5 // pred_check_branch
        %424 = sbr.rel (%p422) target = $region52
      $region51: #{tpu_custom_call.1} parent=5 // pred_region
        %s425 = ssub.s32 %s17, 2
        // Predicated region
        $region53: #{tpu_custom_call.1} parent=51 // pred_check
          %p426 = pneg %p130
        $region54: #{tpu_custom_call.1} parent=51 // pred_check_branch
          %428 = sbr.rel (%p426) target = $region56
        $region55: #{tpu_custom_call.1} parent=51 // pred_region
          %s429 = sand.u32 %s115, 1
          %s430 = scalar_lea.sflag [#allocation4], %s429
          %s431 = sand.u32 %s115, 1
          %s432 = smul.addr %s431, 96
          %s433 = scalar_lea.vmem [#allocation9], %s432
          %434 = dma.done %s430, 1536
        $region56: #{tpu_custom_call.1} parent=51 // pred_fallthru
          _
      $region52: #{tpu_custom_call.1} parent=5 // pred_fallthru
        _
    $region6: #{tpu_custom_call.1} parent=1 // loop_footer
      %s21 = sadd.s32 1, %s17
    $region7: #{tpu_custom_call.1} parent=1 // loop_footer_branch
      %16 = sbr.rel target = $region3
    $region8: #{tpu_custom_call.1} parent=1 // loop_exit
      _
    %435 = vsyncpa [#allocation3], 1
    %s436 = scalar_lea.sflag [#allocation3], 1
    %437 = vsyncpa %s436, 1
    %438 = vsyncpa [#allocation4], 1
    %s439 = scalar_lea.sflag [#allocation4], 1
    %440 = vsyncpa %s439, 1
    %441 = vsyncpa [#allocation5], 1
    %s442 = scalar_lea.sflag [#allocation5], 1
    %443 = vsyncpa %s442, 1
    %444 = vsyncpa [#allocation8], 1

</llo_original>
